<compile_context>
chip_gen: v6e
topology: v6e:2x2x1
jax: 0.10.0
libtpu: 0.0.40
codegen_flags: <defaults>
</compile_context>

<pallas_src>
import functools

import jax
import jax.numpy as jnp
from jax.experimental import pallas as pl
from jax.experimental.pallas import tpu as pltpu

_VMEM_LIMIT = 32 * 1024 * 1024


# ----------------------------------------------------------------------------
# tiling helpers
# ----------------------------------------------------------------------------
def _round_up(x, m):
    return (x + m - 1) // m * m


def _pick_sublane_tile(mp, cap=256, align=8):
    """Largest multiple-of-`align` divisor of mp <= cap, preferring >=2 blocks
    (keeps both v7x TensorCores busy on a parallel grid axis)."""
    divs = [t for t in range(align, min(cap, mp) + 1, align) if mp % t == 0]
    if not divs:
        return mp
    multi = [t for t in divs if mp // t >= 2]
    return max(multi) if multi else max(divs)


def _pick_lane_tile(n, cap=512):
    """Lane (last-dim) tile: a multiple of 128 dividing n, else the full dim
    (full-dim blocks are always legal and avoid padding small channel dims)."""
    if n % 128 != 0:
        return n
    divs = [t for t in range(128, min(cap, n) + 1, 128) if n % t == 0]
    return max(divs) if divs else n


def _pick_k_tile(k, cap=1024):
    if k <= cap or k % 128 != 0:
        return k
    divs = [t for t in range(128, cap + 1, 128) if k % t == 0]
    return max(divs) if divs else k


# ----------------------------------------------------------------------------
# Pallas kernels
# ----------------------------------------------------------------------------
def _matmul_kernel(a_ref, b_ref, o_ref, acc_ref):
    @pl.when(pl.program_id(2) == 0)
    def _():
        acc_ref[...] = jnp.zeros_like(acc_ref)

    acc_ref[...] += jnp.dot(a_ref[...], b_ref[...],
                            preferred_element_type=jnp.float32)

    @pl.when(pl.program_id(2) == pl.num_programs(2) - 1)
    def _():
        o_ref[...] = acc_ref[...].astype(o_ref.dtype)


def pallas_matmul(a, b):
    """(M, K) @ (K, N) -> (M, N) float32; bf16 MXU with f32 accumulation."""
    M, K = a.shape
    K2, N = b.shape
    assert K == K2
    a = a.astype(jnp.bfloat16)
    b = b.astype(jnp.bfloat16)
    Mp = _round_up(M, 16)
    if Mp != M:
        a = jnp.pad(a, ((0, Mp - M), (0, 0)))
    tm = _pick_sublane_tile(Mp, cap=256, align=16)
    tn = _pick_lane_tile(N, cap=512)
    tk = _pick_k_tile(K, cap=1024)
    out = pl.pallas_call(
        _matmul_kernel,
        out_shape=jax.ShapeDtypeStruct((Mp, N), jnp.float32),
        grid_spec=pltpu.PrefetchScalarGridSpec(
            num_scalar_prefetch=0,
            grid=(Mp // tm, N // tn, K // tk),
            in_specs=[pl.BlockSpec((tm, tk), lambda i, j, k: (i, k)),
                      pl.BlockSpec((tk, tn), lambda i, j, k: (k, j))],
            out_specs=pl.BlockSpec((tm, tn), lambda i, j, k: (i, j)),
            scratch_shapes=[pltpu.VMEM((tm, tn), jnp.float32)]),
        compiler_params=pltpu.CompilerParams(
            dimension_semantics=("parallel", "parallel", "arbitrary"),
            vmem_limit_bytes=_VMEM_LIMIT),
        cost_estimate=pl.CostEstimate(
            flops=2 * Mp * N * K, transcendentals=0,
            bytes_accessed=Mp * K * 2 + K * N * 2 + Mp * N * 4),
    )(a, b)
    return out[:M] if Mp != M else out


def _cosine_sim_kernel(xi_ref, xj_ref, o_ref):
    sim = jax.lax.dot_general(xi_ref[0], xj_ref[0], (((1,), (1,)), ((), ())),
                              preferred_element_type=jnp.float32)
    o_ref[0] = sim.astype(o_ref.dtype)


def pallas_cosine_sim(xn):
    """xn: (B, N, C) L2-normalized -> (B, N, N) bf16 cosine similarity.
    Ranking by cos == ranking by -||xi - xj||^2 for unit-norm features."""
    B, N, C = xn.shape
    Np = _round_up(N, 128)
    x = xn.astype(jnp.bfloat16)
    if Np != N:
        x = jnp.pad(x, ((0, 0), (0, Np - N), (0, 0)))
    tm = _pick_sublane_tile(Np, cap=256, align=16)
    tn = _pick_lane_tile(Np, cap=256)
    out = pl.pallas_call(
        _cosine_sim_kernel,
        out_shape=jax.ShapeDtypeStruct((B, Np, Np), jnp.bfloat16),
        grid_spec=pltpu.PrefetchScalarGridSpec(
            num_scalar_prefetch=0,
            grid=(B, Np // tm, Np // tn),
            in_specs=[pl.BlockSpec((1, tm, C), lambda b, i, j: (b, i, 0)),
                      pl.BlockSpec((1, tn, C), lambda b, i, j: (b, j, 0))],
            out_specs=pl.BlockSpec((1, tm, tn), lambda b, i, j: (b, i, j))),
        compiler_params=pltpu.CompilerParams(
            dimension_semantics=("parallel", "parallel", "parallel"),
            vmem_limit_bytes=_VMEM_LIMIT),
        cost_estimate=pl.CostEstimate(
            flops=2 * B * Np * Np * C, transcendentals=0,
            bytes_accessed=2 * B * Np * C * 2 + B * Np * Np * 2),
    )(x, x)
    # padded rows/cols are sliced away before top_k (keep this invariant!)
    return out[:, :N, :N] if Np != N else out


def _scale_shift_act_kernel(x_ref, s_ref, t_ref, o_ref, *, act):
    y = x_ref[...] * s_ref[...] + t_ref[...]
    if act == "gelu":
        # exact (erf) GELU, matching nn.GELU default; EUP handles erf.
        y = 0.5 * y * (1.0 + jax.lax.erf(y * 0.7071067811865476))
    o_ref[...] = y


def pallas_scale_shift_act(x, scale, shift, act=None):
    """Fused BN-apply epilogue: y = act(x * scale + shift), one pass over x."""
    M, C = x.shape
    Mp = _round_up(M, 8)
    xp = jnp.pad(x, ((0, Mp - M), (0, 0))) if Mp != M else x
    tm = _pick_sublane_tile(Mp, cap=256, align=8)
    out = pl.pallas_call(
        functools.partial(_scale_shift_act_kernel, act=act),
        out_shape=jax.ShapeDtypeStruct((Mp, C), jnp.float32),
        grid_spec=pltpu.PrefetchScalarGridSpec(
            num_scalar_prefetch=0,
            grid=(Mp // tm,),
            in_specs=[pl.BlockSpec((tm, C), lambda i: (i, 0)),
                      pl.BlockSpec((1, C), lambda i: (0, 0)),
                      pl.BlockSpec((1, C), lambda i: (0, 0))],
            out_specs=pl.BlockSpec((tm, C), lambda i: (i, 0))),
        compiler_params=pltpu.CompilerParams(
            dimension_semantics=("parallel",),
            vmem_limit_bytes=_VMEM_LIMIT),
    )(xp.astype(jnp.float32), scale.astype(jnp.float32),
      shift.astype(jnp.float32))
    return out[:M] if Mp != M else out


# capability probe: does erf lower inside the Pallas-TPU kernel on this jax
# version?  If not, GELU falls back to plain JAX (semantics identical).
_GELU_IN_KERNEL = False


def probe_gelu_in_kernel():
    global _GELU_IN_KERNEL
    try:
        x = jnp.zeros((8, 128), jnp.float32)
        s = jnp.ones((1, 128), jnp.float32)
        jax.block_until_ready(pallas_scale_shift_act(x, s, s, act="gelu"))
        _GELU_IN_KERNEL = True
    except Exception:
        _GELU_IN_KERNEL = False


# ----------------------------------------------------------------------------
# Glue ops (plain JAX): BN stats, GELU fallback, im2col, gather, top-k
# ----------------------------------------------------------------------------
def gelu(x):
    return jax.nn.gelu(x, approximate=False)   # erf GELU (nn.GELU default)


def bn_apply_act(y, gamma, beta, act=None, eps=1e-5):
    """Training-mode BN over (rows) per channel + optional GELU; stats in one
    pass (E[x], E[x^2]), apply fused into a single Pallas read+write pass."""
    m1 = jnp.mean(y, axis=0)
    m2 = jnp.mean(jnp.square(y), axis=0)
    var = jnp.maximum(m2 - jnp.square(m1), 0.0)
    scale = gamma * jax.lax.rsqrt(var + eps)
    shift = beta - m1 * scale
    in_kernel_act = act if (act is None or _GELU_IN_KERNEL) else None
    out = pallas_scale_shift_act(y, scale[None, :], shift[None, :],
                                 act=in_kernel_act)
    if act == "gelu" and in_kernel_act is None:
        out = gelu(out)
    return out


def linear_bn_act(x, lin, bn, act=None):
    # 1x1 conv / linear over node features, BN (+GELU) fused in the epilogue.
    # The linear bias cancels exactly under training-mode BN, so it is skipped.
    B, N, C = x.shape
    y = pallas_matmul(x.reshape(B * N, C), lin["w"])
    y = bn_apply_act(y, bn["gamma"], bn["beta"], act=act)
    return y.reshape(B, N, -1)


def conv3x3_s2(x_nodes, H, W, conv, bn, act=None):
    # 3x3 stride-2 pad-1 conv via im2col + Pallas matmul, BN (+GELU) fused.
    # TODO(synk): patch extraction still materializes the 9 strided slices in
    # XLA; a fully fused version would stream taps with in-kernel strided DMA.
    B, _, Cin = x_nodes.shape
    x = x_nodes.reshape(B, H, W, Cin)
    xpad = jnp.pad(x, ((0, 0), (1, 1), (1, 1), (0, 0)))
    Ho = (H + 1) // 2
    Wo = (W + 1) // 2
    cols = [xpad[:, kh:kh + 2 * Ho - 1:2, kw:kw + 2 * Wo - 1:2, :]
            for kh in range(3) for kw in range(3)]
    patches = jnp.concatenate(cols, axis=-1).reshape(B * Ho * Wo, 9 * Cin)
    y = pallas_matmul(patches, conv["w"])      # conv bias cancels in the BN
    y = bn_apply_act(y, bn["gamma"], bn["beta"], act=act)
    return y.reshape(B, Ho * Wo, -1), Ho, Wo


# ----------------------------------------------------------------------------
# ViG building blocks
# ----------------------------------------------------------------------------
def stem_forward(p, x, H, W):
    x, H, W = conv3x3_s2(x, H, W, p["conv1"], p["bn1"], act="gelu")
    x, H, W = conv3x3_s2(x, H, W, p["conv2"], p["bn2"], act="gelu")
    return x, H, W


def downsample_forward(p, x, H, W):
    return conv3x3_s2(x, H, W, p["conv"], p["bn"], act=None)


def knn_indices(x, k):
    # L2-normalized features for graph construction (canonical ViG); cosine
    # similarity via the Pallas MXU kernel; dilation = 1 -> plain top-k.
    xn = x * jax.lax.rsqrt(
        jnp.maximum(jnp.sum(x * x, axis=-1, keepdims=True), 1e-24))
    sim = pallas_cosine_sim(xn)                 # (B, N, N) bf16
    # TODO(synk): top-k neighbor selection has no clean Pallas equivalent; XLA.
    _, idx = jax.lax.top_k(sim, k)              # (B, N, k), includes self
    return idx


def mr_graph_conv(p, x, idx):
    # Max-Relative graph conv: rel = max_k (x_neighbor - x_i).
    B, N, C = x.shape
    # TODO(synk): data-dependent neighbor gather stays in XLA; an in-kernel
    # gather (scalar-prefetch idx + per-row DMA) would avoid the (B,N,k,C) blob.
    xj = jax.vmap(lambda feats, ind: feats[ind])(x, idx)      # (B, N, k, C)
    rel = jnp.max(xj - x[:, :, None, :], axis=2)              # (B, N, C)
    # channel concat (not interleave): equivalent to the reference torch
    # cat+reshape up to a fixed permutation of the (synthetic) nn weight rows,
    # and avoids cross-lane shuffles.
    stacked = jnp.concatenate([x, rel], axis=-1)              # (B, N, 2C)
    return linear_bn_act(stacked, p["nn"], p["bn"], act="gelu")


def grapher_forward(p, x, k):
    shortcut = x
    x = linear_bn_act(x, p["fc1"], p["fc1_bn"], act=None)
    idx = knn_indices(x, k)
    x = mr_graph_conv(p["mr"], x, idx)                        # (B, N, 2C)
    x = linear_bn_act(x, p["fc2"], p["fc2_bn"], act=None)
    return x + shortcut


def ffn_forward(p, x):
    shortcut = x
    x = linear_bn_act(x, p["fc1"], p["bn1"], act="gelu")
    x = linear_bn_act(x, p["fc2"], p["bn2"], act=None)
    return x + shortcut


def vig_block_forward(p, x, k):
    x = grapher_forward(p["grapher"], x, k)
    x = ffn_forward(p["ffn"], x)
    return x


def pyramid_vig_forward(params, x_nchw, k=9):
    B, C, H, W = x_nchw.shape
    x = jnp.transpose(x_nchw, (0, 2, 3, 1)).reshape(B, H * W, C)
    x, H, W = stem_forward(params["stem"], x, H, W)
    for blk in params["vig_1"]:
        x = vig_block_forward(blk, x, k)
    x, H, W = downsample_forward(params["down_1"], x, H, W)
    for blk in params["vig_2"]:
        x = vig_block_forward(blk, x, k)
    x, H, W = downsample_forward(params["down_2"], x, H, W)
    for blk in params["vig_3"]:
        x = vig_block_forward(blk, x, k)
    x, H, W = downsample_forward(params["down_3"], x, H, W)
    for blk in params["vig_4"]:
        x = vig_block_forward(blk, x, k)
    x = jnp.mean(x, axis=1)                    # AdaptiveAvgPool2d((1,1)) + flatten
    logits = pallas_matmul(x, params["fc"]["w"]) + params["fc"]["b"][None, :]
    return logits


# ----------------------------------------------------------------------------
# Deterministic parameter construction
# ----------------------------------------------------------------------------
class ParamGen:
    def __init__(self, seed=0):
        self.key = jax.random.PRNGKey(seed)

    def _next(self):
        self.key, k = jax.random.split(self.key)
        return k

    def conv3x3(self, cin, cout):
        fan_in = 9 * cin
        w = jax.random.normal(self._next(), (9 * cin, cout), jnp.float32)
        return {"w": w * (2.0 / fan_in) ** 0.5,
                "b": jnp.zeros((cout,), jnp.float32)}

    def linear(self, cin, cout):
        w = jax.random.normal(self._next(), (cin, cout), jnp.float32)
        return {"w": w * (2.0 / cin) ** 0.5,
                "b": jnp.zeros((cout,), jnp.float32)}

    def bn(self, c):
        return {"gamma": jnp.ones((c,), jnp.float32),
                "beta": jnp.zeros((c,), jnp.float32)}


def init_pyramid_vig(num_class=10, dimensions=(128, 256, 512, 1024),
                     repeat=(2, 2, 18, 2), seed=0):
    g = ParamGen(seed)

    def vig_block(c):
        return {"grapher": {"fc1": g.linear(c, c), "fc1_bn": g.bn(c),
                            "mr": {"nn": g.linear(2 * c, 2 * c), "bn": g.bn(2 * c)},
                            "fc2": g.linear(2 * c, c), "fc2_bn": g.bn(c)},
                "ffn": {"fc1": g.linear(c, 4 * c), "bn1": g.bn(4 * c),
                        "fc2": g.linear(4 * c, c), "bn2": g.bn(c)}}

    p = {"stem": {"conv1": g.conv3x3(3, dimensions[0] // 2),
                  "bn1": g.bn(dimensions[0] // 2),
                  "conv2": g.conv3x3(dimensions[0] // 2, dimensions[0]),
                  "bn2": g.bn(dimensions[0])}}
    p["vig_1"] = [vig_block(dimensions[0]) for _ in range(repeat[0])]
    p["down_1"] = {"conv": g.conv3x3(dimensions[0], dimensions[1]), "bn": g.bn(dimensions[1])}
    p["vig_2"] = [vig_block(dimensions[1]) for _ in range(repeat[1])]
    p["down_2"] = {"conv": g.conv3x3(dimensions[1], dimensions[2]), "bn": g.bn(dimensions[2])}
    p["vig_3"] = [vig_block(dimensions[2]) for _ in range(repeat[2])]
    p["down_3"] = {"conv": g.conv3x3(dimensions[2], dimensions[3]), "bn": g.bn(dimensions[3])}
    p["vig_4"] = [vig_block(dimensions[3]) for _ in range(repeat[3])]
    p["fc"] = g.linear(dimensions[3], num_class)
    return p


# ----------------------------------------------------------------------------
if __name__ == "__main__":
    # decide whether the erf-GELU can run inside the fused epilogue kernel
    probe_gelu_in_kernel()

    # quick sanity check of the bf16 Pallas matmul against an XLA bf16 matmul
    ka, kb = jax.random.split(jax.random.PRNGKey(1))
    a = jax.random.normal(ka, (70, 33), jnp.float32)
    b = jax.random.normal(kb, (33, 45), jnp.float32)
    ref = jnp.dot(a.astype(jnp.bfloat16), b.astype(jnp.bfloat16),
                  preferred_element_type=jnp.float32)
    assert bool(jnp.allclose(pallas_matmul(a, b), ref, atol=2e-2, rtol=2e-2))

    # Scaled-down config for the demo: same architecture / op semantics as the
    # reference (k=9, dilation=1, same block structure); only widths / depths
    # are reduced so the example runs quickly.  Full-size defaults are the
    # paper config (dimensions=[128,256,512,1024], repeat=[2,2,18,2]).
    dims = (16, 32, 64, 128)
    repeat = (1, 1, 2, 1)
    params = init_pyramid_vig(num_class=10, dimensions=dims, repeat=repeat,
                              seed=0)

    x = jax.random.normal(jax.random.PRNGKey(0), (2, 3, 96, 96), jnp.float32)

    fwd = jax.jit(functools.partial(pyramid_vig_forward, k=9))
    out = fwd(params, x)
    out = jax.block_until_ready(out)

    assert out.shape == (2, 10)
    assert bool(jnp.all(jnp.isfinite(out)))
    print("KERNEL_OK")
</pallas_src>

<mosaic_0001>
module attributes {stable_mosaic.version = 11 : i64} {
  func.func @_scale_shift_act_kernel(%arg0: i32, %arg1: memref<8x128xf32, #tpu.memory_space<vmem>>, %arg2: memref<1x128xf32, #tpu.memory_space<vmem>>, %arg3: memref<1x128xf32, #tpu.memory_space<vmem>>, %arg4: memref<8x128xf32, #tpu.memory_space<vmem>>) attributes {dimension_semantics = [#tpu.dimension_semantics<parallel>], iteration_bounds = array<i64: 1>, scalar_prefetch = 0 : i64, scratch_operands = 0 : i64, tpu.core_type = #tpu.core_type<tc>, window_params = [{transform_indices = @transform_0, window_bounds = array<i64: 8, 128>}, {pipeline_mode = #tpu.pipeline_mode<synchronous>, transform_indices = @transform_1, window_bounds = array<i64: 1, 128>}, {pipeline_mode = #tpu.pipeline_mode<synchronous>, transform_indices = @transform_2, window_bounds = array<i64: 1, 128>}, {transform_indices = @transform_3, window_bounds = array<i64: 8, 128>}]} {
    %c0 = arith.constant 0 : index
    %c0_0 = arith.constant 0 : index
    %0 = vector.load %arg1[%c0, %c0_0] : memref<8x128xf32, #tpu.memory_space<vmem>>, vector<8x128xf32>
    %c0_1 = arith.constant 0 : index
    %c0_2 = arith.constant 0 : index
    %1 = vector.load %arg2[%c0_1, %c0_2] : memref<1x128xf32, #tpu.memory_space<vmem>>, vector<1x128xf32>
    %2 = vector.broadcast %1 : vector<1x128xf32> to vector<8x128xf32>
    %3 = arith.mulf %0, %2 : vector<8x128xf32>
    %c0_3 = arith.constant 0 : index
    %c0_4 = arith.constant 0 : index
    %4 = vector.load %arg3[%c0_3, %c0_4] : memref<1x128xf32, #tpu.memory_space<vmem>>, vector<1x128xf32>
    %5 = vector.broadcast %4 : vector<1x128xf32> to vector<8x128xf32>
    %6 = arith.addf %3, %5 : vector<8x128xf32>
    %cst = arith.constant 5.000000e-01 : f32
    %7 = vector.broadcast %cst : f32 to vector<8x128xf32>
    %8 = arith.mulf %7, %6 : vector<8x128xf32>
    %cst_5 = arith.constant 0.707106769 : f32
    %9 = vector.broadcast %cst_5 : f32 to vector<8x128xf32>
    %10 = arith.mulf %6, %9 : vector<8x128xf32>
    %11 = math.erf %10 : vector<8x128xf32>
    %cst_6 = arith.constant 1.000000e+00 : f32
    %12 = vector.broadcast %cst_6 : f32 to vector<8x128xf32>
    %13 = arith.addf %12, %11 : vector<8x128xf32>
    %14 = arith.mulf %8, %13 : vector<8x128xf32>
    %c0_7 = arith.constant 0 : index
    %c0_8 = arith.constant 0 : index
    %15 = vector.load %arg4[%c0_7, %c0_8] : memref<8x128xf32, #tpu.memory_space<vmem>>, vector<8x128xf32>
    tpu.vector_store %arg4[%c0_7, %c0_8], %14 {strides = array<i32>} : memref<8x128xf32, #tpu.memory_space<vmem>>, vector<8x128xf32>,
    return
  }
  func.func @transform_0(%arg0: i32) -> (i32, i32) {
    %c0_i32 = arith.constant 0 : i32
    %c0_i32_0 = arith.constant 0 : i32
    return %arg0, %c0_i32 : i32, i32
  }
  func.func @transform_1(%arg0: i32) -> (i32, i32) {
    %c0_i32 = arith.constant 0 : i32
    %c0_i32_0 = arith.constant 0 : i32
    %c0_i32_1 = arith.constant 0 : i32
    return %c0_i32, %c0_i32_0 : i32, i32
  }
  func.func @transform_2(%arg0: i32) -> (i32, i32) {
    %c0_i32 = arith.constant 0 : i32
    %c0_i32_0 = arith.constant 0 : i32
    %c0_i32_1 = arith.constant 0 : i32
    return %c0_i32, %c0_i32_0 : i32, i32
  }
  func.func @transform_3(%arg0: i32) -> (i32, i32) {
    %c0_i32 = arith.constant 0 : i32
    %c0_i32_0 = arith.constant 0 : i32
    return %arg0, %c0_i32 : i32, i32
  }
}

module attributes {stable_mosaic.version = 11 : i64} {
  func.func @_matmul_kernel(%arg0: i32, %arg1: i32, %arg2: i32, %arg3: memref<16x33xbf16, #tpu.memory_space<vmem>>, %arg4: memref<33x45xbf16, #tpu.memory_space<vmem>>, %arg5: memref<16x45xf32, #tpu.memory_space<vmem>>, %arg6: memref<16x45xf32, #tpu.memory_space<vmem>>) attributes {dimension_semantics = [#tpu.dimension_semantics<parallel>, #tpu.dimension_semantics<parallel>, #tpu.dimension_semantics<arbitrary>], iteration_bounds = array<i64: 5, 1, 1>, scalar_prefetch = 0 : i64, scratch_operands = 1 : i64, tpu.core_type = #tpu.core_type<tc>, window_params = [{transform_indices = @transform_0, window_bounds = array<i64: 16, 33>}, {transform_indices = @transform_1, window_bounds = array<i64: 33, 45>}, {transform_indices = @transform_2, window_bounds = array<i64: 16, 45>}]} {
    %c0_i32 = arith.constant 0 : i32
    %0 = arith.cmpi eq, %arg2, %c0_i32 : i32
    %1 = arith.extui %0 : i1 to i32
    %c0_i32_0 = arith.constant 0 : i32
    %2 = arith.cmpi ne, %1, %c0_i32_0 : i32
    scf.if %2 {
      %cst_10 = arith.constant 0.000000e+00 : f32
      %12 = vector.broadcast %cst_10 : f32 to vector<16x45xf32>
      %c0_11 = arith.constant 0 : index
      %c0_12 = arith.constant 0 : index
      %13 = vector.load %arg6[%c0_11, %c0_12] : memref<16x45xf32, #tpu.memory_space<vmem>>, vector<16x45xf32>
      tpu.vector_store %arg6[%c0_11, %c0_12], %12 {strides = array<i32>} : memref<16x45xf32, #tpu.memory_space<vmem>>, vector<16x45xf32>,
    } else {
    }
    %c0 = arith.constant 0 : index
    %c0_1 = arith.constant 0 : index
    %3 = vector.load %arg6[%c0, %c0_1] : memref<16x45xf32, #tpu.memory_space<vmem>>, vector<16x45xf32>
    %c0_2 = arith.constant 0 : index
    %c0_3 = arith.constant 0 : index
    %4 = vector.load %arg3[%c0_2, %c0_3] : memref<16x33xbf16, #tpu.memory_space<vmem>>, vector<16x33xbf16>
    %c0_4 = arith.constant 0 : index
    %c0_5 = arith.constant 0 : index
    %5 = vector.load %arg4[%c0_4, %c0_5] : memref<33x45xbf16, #tpu.memory_space<vmem>>, vector<33x45xbf16>
    %cst = arith.constant dense<0.000000e+00> : vector<16x45xf32>
    %6 = tpu.matmul %4, %5, %cst {dimension_numbers = #tpu.dot_dimension_numbers<[1], [0], [0], [1], [0, 0, 1, 1], [], []>} : vector<16x33xbf16>, vector<33x45xbf16>, vector<16x45xf32> -> vector<16x45xf32>
    %7 = arith.addf %3, %6 : vector<16x45xf32>
    %c0_6 = arith.constant 0 : index
    %c0_7 = arith.constant 0 : index
    %8 = vector.load %arg6[%c0_6, %c0_7] : memref<16x45xf32, #tpu.memory_space<vmem>>, vector<16x45xf32>
    tpu.vector_store %arg6[%c0_6, %c0_7], %7 {strides = array<i32>} : memref<16x45xf32, #tpu.memory_space<vmem>>, vector<16x45xf32>,
    %c0_i32_8 = arith.constant 0 : i32
    %9 = arith.cmpi eq, %arg2, %c0_i32_8 : i32
    %10 = arith.extui %9 : i1 to i32
    %c0_i32_9 = arith.constant 0 : i32
    %11 = arith.cmpi ne, %10, %c0_i32_9 : i32
    scf.if %11 {
      %c0_10 = arith.constant 0 : index
      %c0_11 = arith.constant 0 : index
      %12 = vector.load %arg6[%c0_10, %c0_11] : memref<16x45xf32, #tpu.memory_space<vmem>>, vector<16x45xf32>
      %c0_12 = arith.constant 0 : index
      %c0_13 = arith.constant 0 : index
      %13 = vector.load %arg5[%c0_12, %c0_13] : memref<16x45xf32, #tpu.memory_space<vmem>>, vector<16x45xf32>
      tpu.vector_store %arg5[%c0_12, %c0_13], %12 {strides = array<i32>} : memref<16x45xf32, #tpu.memory_space<vmem>>, vector<16x45xf32>,
    } else {
    }
    return
  }
  func.func @transform_0(%arg0: i32, %arg1: i32, %arg2: i32) -> (i32, i32) {
    %c0_i32 = arith.constant 0 : i32
    return %arg0, %arg2 : i32, i32
  }
  func.func @transform_1(%arg0: i32, %arg1: i32, %arg2: i32) -> (i32, i32) {
    %c0_i32 = arith.constant 0 : i32
    return %arg2, %arg1 : i32, i32
  }
  func.func @transform_2(%arg0: i32, %arg1: i32, %arg2: i32) -> (i32, i32) {
    %c0_i32 = arith.constant 0 : i32
    return %arg0, %arg1 : i32, i32
  }
}

</mosaic_0001>

<llo_original>
// kernel: tpu_custom_call.1
$region0: #{tpu_custom_call.1}
  #allocation0 [shape = 'u32[]', space=smem, size = 0x4, offset = 0x4, fixed_abs, tag = 'smem constant byte address 0x4 - core index']
  #allocation1 [shape = 'u32[144,128]{1,0:T(1,128)}', space=vmem, size = 0x12000, scoped, tag = 'internal scratch']
  %s0 = inlined_call_operand.hbm [shape: f32[8,128], index: 0, kind: input, shape index: {}]
  %s1 = inlined_call_operand.vmem [shape: f32[1,128], index: 1, kind: input, shape index: {}]
  %s2 = inlined_call_operand.vmem [shape: f32[1,128], index: 2, kind: input, shape index: {}]
  %s3 = inlined_call_operand.hbm [shape: f32[8,128], index: 3, kind: output, shape index: {}]
  %s4 = sld [smem:[#allocation0]]
  $region26: #{tpu_custom_call.1} parent=0
    _
  %s6 = ssub.s32 1, %s4
  %s7 = scalar_select 0, %s6, %s4
  $region1: #{tpu_custom_call.1} parent=0
    #allocation2 [shape = 'u8[4096]{0}', space=vmem, size = 0x1000, scoped, tag = 'input window, operand 0, single buffered']
    #allocation3 [shape = 's32[1]{0}', space=sflag, size = 0x4, scoped, tag = 'scoped memory for tpu_custom_call.1']
    #allocation4 [shape = 's32[1]{0}', space=sflag, size = 0x4, scoped, tag = 'scoped memory for tpu_custom_call.1']
    #allocation5 [shape = 'u8[4096]{0}', space=vmem, size = 0x1000, scoped, tag = 'output window, operand 0, single buffered']
    %8 = vsyncpa [#allocation3], 0
    %9 = vsyncpa [#allocation4], 0
    // Predicated region
    $region2: #{tpu_custom_call.1} parent=1 // pred_check
      _
    $region3: #{tpu_custom_call.1} parent=1 // pred_check_branch
      %11 = sbr.rel (0) target = $region5
    $region4: #{tpu_custom_call.1} parent=1 // pred_region
      %s13 = ssub.s32 128, 128
      %14 = vsyncadd [#allocation3], %s13
      %s16 = sshll.u32 [#allocation2], 4
      %s17 = int_to_ptr.vmem [resolvable:$true] %s16
      %19 = dma.hbm_to_vmem [thread:$0]  %s0, 128, %s17, [#allocation3]
    $region5: #{tpu_custom_call.1} parent=1 // pred_fallthru
      _
    // Predicated region
    $region6: #{tpu_custom_call.1} parent=1 // pred_check
      _
    $region7: #{tpu_custom_call.1} parent=1 // pred_check_branch
      %21 = sbr.rel (0) target = $region9
    $region8: #{tpu_custom_call.1} parent=1 // pred_region
      _
    $region9: #{tpu_custom_call.1} parent=1 // pred_fallthru
      _
    // Predicated region
    $region10: #{tpu_custom_call.1} parent=1 // pred_check
      _
    $region11: #{tpu_custom_call.1} parent=1 // pred_check_branch
      %23 = sbr.rel (0) target = $region13
    $region12: #{tpu_custom_call.1} parent=1 // pred_region
      _
    $region13: #{tpu_custom_call.1} parent=1 // pred_fallthru
      _
    // Predicated region
    $region14: #{tpu_custom_call.1} parent=1 // pred_check
      _
    $region15: #{tpu_custom_call.1} parent=1 // pred_check_branch
      %25 = sbr.rel (0) target = $region17
    $region16: #{tpu_custom_call.1} parent=1 // pred_region
      %26 = dma.done [#allocation3], 128
    $region17: #{tpu_custom_call.1} parent=1 // pred_fallthru
      _
    %v27 = vld [vmem:[#allocation2] sm:$0xff]
    %v28 = vld [vmem:[%s1] sm:$0x1]
    %v30 = vlaneseq
    %v31 = vshrl.u32 %v30, 7
    %v32 = vsub.s32 0, %v31
    %v33 = vrot.slane %v28, %v32
    %v35 = vmul.f32 %v27, %v33
    %v36 = vld [vmem:[%s2] sm:$0x1]
    %v38 = vlaneseq
    %v39 = vshrl.u32 %v38, 7
    %v40 = vsub.s32 0, %v39
    %v41 = vrot.slane %v36, %v40
    %v43 = vadd.f32 %v35, %v41
    %v44 = vmul.f32 %v43, 0.5
    %v45 = vmul.f32 %v43, 0.70710677
    %v46 = verf.f32.pop %v45
    %v47 = vadd.f32 %v46, 1.0
    %v48 = vmul.f32 %v44, %v47
    %49 = vst [vmem:[#allocation5] sm:$0xff] %v48
    // Predicated region
    $region18: #{tpu_custom_call.1} parent=1 // pred_check
      _
    $region19: #{tpu_custom_call.1} parent=1 // pred_check_branch
      %51 = sbr.rel (0) target = $region21
    $region20: #{tpu_custom_call.1} parent=1 // pred_region
      %s53 = ssub.s32 128, 128
      %54 = vsyncadd [#allocation4], %s53
      %s56 = sshll.u32 [#allocation5], 4
      %s57 = int_to_ptr.vmem [resolvable:$true] %s56
      %59 = dma.vmem_to_hbm [thread:$0]  %s57, 128, %s3, [#allocation4]
    $region21: #{tpu_custom_call.1} parent=1 // pred_fallthru
      _
    // Predicated region
    $region22: #{tpu_custom_call.1} parent=1 // pred_check
      _
    $region23: #{tpu_custom_call.1} parent=1 // pred_check_branch
      %61 = sbr.rel (0) target = $region25
    $region24: #{tpu_custom_call.1} parent=1 // pred_region
      %62 = dma.done [#allocation4], 128
    $region25: #{tpu_custom_call.1} parent=1 // pred_fallthru
      _
    %63 = vsyncpa [#allocation3], 1
    %64 = vsyncpa [#allocation4], 1

// kernel: tpu_custom_call.1
$region0: #{tpu_custom_call.1}
  #allocation0 [shape = 'u32[]', space=smem, size = 0x4, offset = 0x4, fixed_abs, tag = 'smem constant byte address 0x4 - core index']
  #allocation1 [shape = 'u32[144,128]{1,0:T(1,128)}', space=vmem, size = 0x12000, scoped, tag = 'internal scratch']
  #allocation2 [shape = 'f32[16,45]{1,0:T(8,128)}', space=vmem, size = 0x2000, scoped, tag = 'scratch operand']
  %s0 = inlined_call_operand.vmem [shape: bf16[80,33], index: 0, kind: input, shape index: {}]
  %s1 = inlined_call_operand.vmem [shape: bf16[33,45], index: 1, kind: input, shape index: {}]
  %s2 = inlined_call_operand.vmem [shape: f32[80,45], index: 2, kind: output, shape index: {}]
  %s3 = sld [smem:[#allocation0]]
  $region49: #{tpu_custom_call.1} parent=0
    _
  %s5 = ssub.s32 1, %s3
  %s6 = scalar_select 0, %s5, %s3
  loop: start=0, step=1, limit=7
  $region2: #{tpu_custom_call.1} parent=0 // loop_pre_header
    _
  $region3: #{tpu_custom_call.1} parent=0 // loop_header
    %s8 = sphi 0, %s12
    %p9 = scmp.ge.s32.totalorder %s8, 7
    %s15 = sphi 0, %s34
    %s16 = sphi 0, %s30
    %s17 = sphi 0, %s26
    %s18 = sphi 0, %s15
    %s19 = sphi 0, %s16
    %s20 = sphi 0, %s17
    %s21 = sphi 0, %s18
    %s22 = sphi 0, %s19
    %s23 = sphi 0, %s20
    %s39 = sphi 0, %s41
    %s42 = sphi 0, %s39
    %s43 = sphi 0, %s42
    %s59 = sphi 0, %s43
    %s67 = sphi 0, %s69
    %s70 = sphi 0, %s67
    %s71 = sphi 0, %s70
    %s87 = sphi 0, %s71
    %s95 = sphi 0, %s97
    %s98 = sphi 0, %s95
    %s99 = sphi 0, %s98
    %s115 = sphi 0, %s99
  $region4: #{tpu_custom_call.1} parent=0 // loop_header_branch
    %11 = sbr.rel (%p9) target = $region8
  $region5: #{tpu_custom_call.1} parent=0 // loop_body
    %s13 = ssub.s32 %s8, 1
    %s14 = ssub.s32 %s8, 2
    %s24 = sadd.s32 1, %s17
    %p25 = scmp.ge.s32.totalorder %s24, 1
    %s26 = scalar_select %p25, 0, %s24
    %s27 = sadd.s32 1, %s16
    %s28 = scalar_select %p25, %s27, %s16
    %p29 = scmp.ge.s32.totalorder %s28, 1
    %s30 = scalar_select %p29, 0, %s28
    %s31 = sadd.s32 1, %s15
    %s32 = scalar_select %p29, %s31, %s15
    %p33 = scmp.ge.s32.totalorder %s32, 5
    %s34 = scalar_select %p33, 0, %s32
    %s35 = ssub.s32 %s15, %s34
    %s36 = ssub.s32 %s17, %s26
    %s37 = sor.u32 %s35, %s36
    %p38 = scmp.eq.s32.totalorder %s37, 0
    %s40 = sadd.s32 %s39, 1
    %s41 = scalar_select %p38, %s39, %s40
    %p44 = pneg %p38
    %p45 = scmp.eq.s32.totalorder %s8, 4
    %p46 = por %p44, %p45
    %p47 = scmp.ne.s32.totalorder %s39, %s42
    %p48 = scmp.eq.s32.totalorder %s8, 0
    %p49 = por %p47, %p48
    %p50 = scmp.ne.s32.totalorder %s39, %s42
    %p51 = scmp.eq.s32.totalorder %s13, 4
    %p52 = por %p50, %p51
    %p53 = scmp.ne.s32.totalorder %s42, %s43
    %p54 = scmp.eq.s32.totalorder %s13, 0
    %p55 = por %p53, %p54
    %p56 = scmp.ne.s32.totalorder %s42, %s43
    %p57 = scmp.eq.s32.totalorder %s14, 4
    %p58 = por %p56, %p57
    %p60 = scmp.ne.s32.totalorder %s43, %s59
    %p61 = scmp.eq.s32.totalorder %s14, 0
    %p62 = por %p60, %p61
    %s63 = ssub.s32 %s17, %s26
    %s64 = ssub.s32 %s16, %s30
    %s65 = sor.u32 %s63, %s64
    %p66 = scmp.eq.s32.totalorder %s65, 0
    %s68 = sadd.s32 %s67, 1
    %s69 = scalar_select %p66, %s67, %s68
    %p72 = pneg %p66
    %p73 = scmp.eq.s32.totalorder %s8, 4
    %p74 = por %p72, %p73
    %p75 = scmp.ne.s32.totalorder %s67, %s70
    %p76 = scmp.eq.s32.totalorder %s8, 0
    %p77 = por %p75, %p76
    %p78 = scmp.ne.s32.totalorder %s67, %s70
    %p79 = scmp.eq.s32.totalorder %s13, 4
    %p80 = por %p78, %p79
    %p81 = scmp.ne.s32.totalorder %s70, %s71
    %p82 = scmp.eq.s32.totalorder %s13, 0
    %p83 = por %p81, %p82
    %p84 = scmp.ne.s32.totalorder %s70, %s71
    %p85 = scmp.eq.s32.totalorder %s14, 4
    %p86 = por %p84, %p85
    %p88 = scmp.ne.s32.totalorder %s71, %s87
    %p89 = scmp.eq.s32.totalorder %s14, 0
    %p90 = por %p88, %p89
    %s91 = ssub.s32 %s15, %s34
    %s92 = ssub.s32 %s16, %s30
    %s93 = sor.u32 %s91, %s92
    %p94 = scmp.eq.s32.totalorder %s93, 0
    %s96 = sadd.s32 %s95, 1
    %s97 = scalar_select %p94, %s95, %s96
    %p100 = pneg %p94
    %p101 = scmp.eq.s32.totalorder %s8, 4
    %p102 = por %p100, %p101
    %p103 = scmp.ne.s32.totalorder %s95, %s98
    %p104 = scmp.eq.s32.totalorder %s8, 0
    %p105 = por %p103, %p104
    %p106 = scmp.ne.s32.totalorder %s95, %s98
    %p107 = scmp.eq.s32.totalorder %s13, 4
    %p108 = por %p106, %p107
    %p109 = scmp.ne.s32.totalorder %s98, %s99
    %p110 = scmp.eq.s32.totalorder %s13, 0
    %p111 = por %p109, %p110
    %p112 = scmp.ne.s32.totalorder %s98, %s99
    %p113 = scmp.eq.s32.totalorder %s14, 4
    %p114 = por %p112, %p113
    %p116 = scmp.ne.s32.totalorder %s99, %s115
    %p117 = scmp.eq.s32.totalorder %s14, 0
    %p118 = por %p116, %p117
    %p119 = scmp.le.s32.totalorder 1, %s8
    %p120 = scmp.lt.s32.totalorder %s8, 6
    %p121 = pnand %p119, %p120
    %p122 = pneg %p121
    // Predicated region
    $region9: #{tpu_custom_call.1} parent=5 // pred_check
      _
    $region10: #{tpu_custom_call.1} parent=5 // pred_check_branch
      %124 = sbr.rel (%p121) target = $region12
    $region11: #{tpu_custom_call.1} parent=5 // pred_region
      %s125 = ssub.s32 %s8, 1
      // Predicated region
      $region13: #{tpu_custom_call.1} parent=11 // pred_check
        %p126 = pneg %p83
      $region14: #{tpu_custom_call.1} parent=11 // pred_check_branch
        %128 = sbr.rel (%p126) target = $region16
      $region15: #{tpu_custom_call.1} parent=11 // pred_region
        %s129 = smul.u32 5, %s20
        %p130 = scmp.lt.s32.totalorder %s129, 4
        %s131 = scalar_select %p130, %s129, 4
        %p132 = scmp.lt.s32.totalorder %s19, 0
        %s133 = scalar_select %p132, %s19, 0
        %s134 = sadd.s32 %s133, %s131
        %s135 = smul.addr %s134, 4
        %s136 = scalar_lea.vmem %s1, %s135
        %s137 = smul.u32 5, %s20
      $region16: #{tpu_custom_call.1} parent=11 // pred_fallthru
        _
    $region12: #{tpu_custom_call.1} parent=5 // pred_fallthru
      _
    %p138 = scmp.lt.s32.totalorder %s8, 5
    // Predicated region
    $region17: #{tpu_custom_call.1} parent=5 // pred_check
      %p139 = pneg %p138
    $region18: #{tpu_custom_call.1} parent=5 // pred_check_branch
      %141 = sbr.rel (%p139) target = $region20
    $region19: #{tpu_custom_call.1} parent=5 // pred_region
      // Predicated region
      $region21: #{tpu_custom_call.1} parent=19 // pred_check
        %p142 = pneg %p49
      $region22: #{tpu_custom_call.1} parent=19 // pred_check_branch
        %144 = sbr.rel (%p142) target = $region24
      $region23: #{tpu_custom_call.1} parent=19 // pred_region
        %s145 = smul.u32 2, %s15
        %p146 = scmp.lt.s32.totalorder %s145, 9
        %s147 = scalar_select %p146, %s145, 9
        %p148 = scmp.lt.s32.totalorder %s17, 0
        %s149 = scalar_select %p148, %s17, 0
        %s150 = sadd.s32 %s149, %s147
        %s151 = smul.addr %s150, 4
        %s152 = scalar_lea.vmem %s0, %s151
        %s153 = smul.u32 2, %s15
      $region24: #{tpu_custom_call.1} parent=19 // pred_fallthru
        _
    $region20: #{tpu_custom_call.1} parent=5 // pred_fallthru
      _
    %p154 = scmp.le.s32.totalorder 1, %s8
    %p155 = scmp.lt.s32.totalorder %s8, 6
    %p156 = pnand %p154, %p155
    %p157 = pneg %p156
    // Predicated region
    $region25: #{tpu_custom_call.1} parent=5 // pred_check
      _
    $region26: #{tpu_custom_call.1} parent=5 // pred_check_branch
      %159 = sbr.rel (%p156) target = $region28
    $region27: #{tpu_custom_call.1} parent=5 // pred_region
      %s160 = ssub.s32 %s8, 1
      %s161 = smul.u32 2, %s18
      %p162 = scmp.lt.s32.totalorder %s161, 9
      %s163 = scalar_select %p162, %s161, 9
      %p164 = scmp.lt.s32.totalorder %s20, 0
      %s165 = scalar_select %p164, %s20, 0
      %s166 = sadd.s32 %s165, %s163
      %s167 = smul.addr %s166, 4
      %s168 = scalar_lea.vmem %s0, %s167
      %p169 = pneg %p55
      %p170 = pneg %p52
      %s171 = smul.u32 5, %s20
      %p172 = scmp.lt.s32.totalorder %s171, 4
      %s173 = scalar_select %p172, %s171, 4
      %p174 = scmp.lt.s32.totalorder %s19, 0
      %s175 = scalar_select %p174, %s19, 0
      %s176 = sadd.s32 %s175, %s173
      %s177 = smul.addr %s176, 4
      %s178 = scalar_lea.vmem %s1, %s177
      %p179 = pneg %p83
      %p180 = pneg %p80
      %p181 = pneg %p111
      %p182 = pneg %p108
      %s183 = smul.u32 2, %s18
      %p184 = scmp.lt.s32.totalorder %s183, 9
      %s185 = scalar_select %p184, %s183, 9
      %p186 = scmp.lt.s32.totalorder %s19, 0
      %s187 = scalar_select %p186, %s19, 0
      %s188 = sadd.s32 %s187, %s185
      %s189 = smul.addr %s188, 8
      %s190 = scalar_lea.vmem %s2, %s189
      %s191 = smul.u32 2, %s18
      %p192 = scmp.lt.s32.totalorder %s191, 9
      %s193 = scalar_select %p192, %s191, 9
      %p194 = scmp.lt.s32.totalorder %s20, 0
      %s195 = scalar_select %p194, %s20, 0
      %s196 = sadd.s32 %s195, %s193
      %s197 = smul.addr %s196, 4
      %s198 = scalar_lea.vmem %s0, %s197
      %s199 = smul.u32 2, %s18
      %s200 = smul.u32 5, %s20
      %p201 = scmp.lt.s32.totalorder %s200, 4
      %s202 = scalar_select %p201, %s200, 4
      %p203 = scmp.lt.s32.totalorder %s19, 0
      %s204 = scalar_select %p203, %s19, 0
      %s205 = sadd.s32 %s204, %s202
      %s206 = smul.addr %s205, 4
      %s207 = scalar_lea.vmem %s1, %s206
      %s208 = smul.u32 5, %s20
      %s209 = smul.u32 2, %s18
      %p210 = scmp.lt.s32.totalorder %s209, 9
      %s211 = scalar_select %p210, %s209, 9
      %p212 = scmp.lt.s32.totalorder %s19, 0
      %s213 = scalar_select %p212, %s19, 0
      %s214 = sadd.s32 %s213, %s211
      %s215 = smul.addr %s214, 8
      %s216 = scalar_lea.vmem %s2, %s215
      %s217 = smul.u32 2, %s18
      %p219 = scmp.eq.s32.totalorder %s20, 0
      // Predicated region
      $region29: #{tpu_custom_call.1} parent=27 // pred_check
        %p220 = pneg %p219
      $region30: #{tpu_custom_call.1} parent=27 // pred_check_branch
        %222 = sbr.rel (%p220) target = $region32
      $region31: #{tpu_custom_call.1} parent=27 // pred_region
        %vm223 = vcmask 367616
        %224 = vst.msk [vmem:[#allocation2] sm:$0xff] %vm223, 0.0
        %225 = vst.msk [vmem:[#allocation2 + $0x8] sm:$0xff] %vm223, 0.0
      $region32: #{tpu_custom_call.1} parent=27 // pred_fallthru
        _
      %v226 = vld [vmem:[#allocation2] sm:$0xff]
      %v227 = vld [vmem:[#allocation2 + $0x8] sm:$0xff]
      %v228 = vld [vmem:[%s198] sm:$0xf]
      %v229 = vld [vmem:[%s198 + $0x4] sm:$0xf]
      %v230 = vld [vmem:[%s207] sm:$0xf]
      %v231 = vld [vmem:[%s207 + $0x4] sm:$0xf]
      %v232 = vld [vmem:[%s207 + $0x8] sm:$0xf]
      %v233 = vld [vmem:[%s207 + $0xc] sm:$0xf]
      %v234 = vld [vmem:[%s207 + $0x10] sm:$0x1]
      %v237 = vunpack.c.l.b16 %v228
      %v238 = vunpack.c.l.b16 %v229
      %v239 = vpack.c.b16 %v238, %v237
      %v245 = vunpack.c.l.b16 %v230
      %v246 = vunpack.c.l.b16 %v231
      %v247 = vunpack.c.l.b16 %v232
      %v248 = vunpack.c.l.b16 %v233
      %v249 = vunpack.c.l.b16 %v234
      %v250 = vpack.c.b16 %v246, %v245
      %v251 = vpack.c.b16 %v248, %v247
      %v252 = vpack.c.b16 %v249, %v249
      %vm255 = vcmask 269312
      %v257 = vsel %vm255, %v239, 0
      %vm259 = vcmask 1040384
      %v260 = vsel 0, 4294967295, 65535
      %v261 = vsel %vm259, %v260, 0
      %v263 = vand.u32 %v252, %v261
      %265 = vmatprep.subr.bf16.mxu0 0
      %266 = vmatpush1.bf16.msra.mxu0 0
      %267 = vmatprep.subr.bf16.mxu0 0
      %268 = vmatpush1.bf16.msra.mxu0 0
      %269 = vmatprep.subr.bf16.mxu0 0
      %270 = vmatpush1.bf16.msra.mxu0 0
      %271 = vmatprep.subr.bf16.mxu0 0
      %272 = vmatpush1.bf16.msra.mxu0 0
      %273 = vmatprep.subr.bf16.mxu0 0
      %274 = vmatpush1.bf16.msra.mxu0 0
      %275 = vmatprep.subr.bf16.mxu0 0
      %276 = vmatpush1.bf16.msra.mxu0 %v263
      %277 = vmatprep.subr.bf16.mxu0 0
      %278 = vmatpush1.bf16.msra.mxu0 %v251
      %279 = vmatprep.subr.bf16.mxu0 0
      %280 = vmatpush1.bf16.msra.mxu0 %v250
      %281 = vmatprep.subr.bf16.mxu0 0
      %282 = vmatpush2.bf16.msra.mxu0 0
      %283 = vmatprep.subr.bf16.mxu0 0
      %284 = vmatpush2.bf16.msra.mxu0 0
      %285 = vmatprep.subr.bf16.mxu0 0
      %286 = vmatpush2.bf16.msra.mxu0 0
      %287 = vmatprep.subr.bf16.mxu0 0
      %288 = vmatpush2.bf16.msra.mxu0 0
      %289 = vmatprep.subr.bf16.mxu0 0
      %290 = vmatpush2.bf16.msra.mxu0 0
      %291 = vmatprep.subr.bf16.mxu0 0
      %292 = vmatpush2.bf16.msra.mxu0 0
      %293 = vmatprep.subr.bf16.mxu0 0
      %294 = vmatpush2.bf16.msra.mxu0 0
      %295 = vmatprep.subr.bf16.mxu0 0
      %296 = vmatpush2.bf16.msra.mxu0 0
      %297 = vmatprep.mubr.bf16.mxu0 0
      %298 = vmatmul.mubr.bf16.gmra.mxu0 %v257
      %v299 = vpop.f32.mrf.mxu0
      %v300 = vadd.f32 0.0, %v299
      %v301 = vpop.f32.mrf.mxu0
      %v302 = vpop.f32.mrf.mxu0
      %v303 = vadd.f32 0.0, %v302
      %v304 = vpop.f32.mrf.mxu0
      %305 = vdwg.mxu0
      %v306 = vadd.f32 %v226, %v300
      %v307 = vadd.f32 %v227, %v303
      %vm308 = vcmask 367616
      %309 = vst.msk [vmem:[#allocation2] sm:$0xff] %vm308, %v306
      %310 = vst.msk [vmem:[#allocation2 + $0x8] sm:$0xff] %vm308, %v307
      // Predicated region
      $region33: #{tpu_custom_call.1} parent=27 // pred_check
        %p311 = pneg %p219
      $region34: #{tpu_custom_call.1} parent=27 // pred_check_branch
        %313 = sbr.rel (%p311) target = $region36
      $region35: #{tpu_custom_call.1} parent=27 // pred_region
        %v314 = vld [vmem:[#allocation2] sm:$0xff]
        %v315 = vld [vmem:[#allocation2 + $0x8] sm:$0xff]
        %316 = vst.msk [vmem:[%s216] sm:$0xff] %vm308, %v314
        %317 = vst.msk [vmem:[%s216 + $0x8] sm:$0xff] %vm308, %v315
      $region36: #{tpu_custom_call.1} parent=27 // pred_fallthru
        _
      %s318 = smul.u32 2, %s18
      %p319 = scmp.lt.s32.totalorder %s318, 9
      %s320 = scalar_select %p319, %s318, 9
      %p321 = scmp.lt.s32.totalorder %s19, 0
      %s322 = scalar_select %p321, %s19, 0
      %s323 = sadd.s32 %s322, %s320
      %s324 = smul.addr %s323, 8
      %s325 = scalar_lea.vmem %s2, %s324
      // Predicated region
      $region37: #{tpu_custom_call.1} parent=27 // pred_check
        %p326 = pneg %p108
      $region38: #{tpu_custom_call.1} parent=27 // pred_check_branch
        %328 = sbr.rel (%p326) target = $region40
      $region39: #{tpu_custom_call.1} parent=27 // pred_region
        %s329 = smul.u32 2, %s18
      $region40: #{tpu_custom_call.1} parent=27 // pred_fallthru
        _
    $region28: #{tpu_custom_call.1} parent=5 // pred_fallthru
      _
    %p330 = scmp.le.s32.totalorder 2, %s8
    // Predicated region
    $region41: #{tpu_custom_call.1} parent=5 // pred_check
      %p331 = pneg %p330
    $region42: #{tpu_custom_call.1} parent=5 // pred_check_branch
      %333 = sbr.rel (%p331) target = $region44
    $region43: #{tpu_custom_call.1} parent=5 // pred_region
      %s334 = ssub.s32 %s8, 2
      // Predicated region
      $region45: #{tpu_custom_call.1} parent=43 // pred_check
        %p335 = pneg %p114
      $region46: #{tpu_custom_call.1} parent=43 // pred_check_branch
        %337 = sbr.rel (%p335) target = $region48
      $region47: #{tpu_custom_call.1} parent=43 // pred_region
        %s338 = smul.u32 2, %s21
        %p339 = scmp.lt.s32.totalorder %s338, 9
        %s340 = scalar_select %p339, %s338, 9
        %p341 = scmp.lt.s32.totalorder %s22, 0
        %s342 = scalar_select %p341, %s22, 0
        %s343 = sadd.s32 %s342, %s340
        %s344 = smul.addr %s343, 8
        %s345 = scalar_lea.vmem %s2, %s344
      $region48: #{tpu_custom_call.1} parent=43 // pred_fallthru
        _
    $region44: #{tpu_custom_call.1} parent=5 // pred_fallthru
      _
  $region6: #{tpu_custom_call.1} parent=0 // loop_footer
    %s12 = sadd.s32 1, %s8
  $region7: #{tpu_custom_call.1} parent=0 // loop_footer_branch
    %7 = sbr.rel target = $region3
  $region8: #{tpu_custom_call.1} parent=0 // loop_exit
    _

</llo_original>
